<compile_context>
chip_gen: v5e
topology: v5e:2x2
jax: 0.10.0
libtpu: 0.0.40
codegen_flags: <defaults>
</compile_context>

<pallas_src>
import functools

import jax
import jax.numpy as jnp
from jax.experimental import pallas as pl
from jax.experimental.pallas import tpu as pltpu


def _silu(x):
    return x * jax.nn.sigmoid(x)


def _head_layer_kernel(x_ref, w1_ref, b1_ref, w2_ref, b2_ref, w3_ref, b3_ref,
                       o_ref, pooled_acc,
                       *, reduce_axis, l_total, l_tile):
    """Grid = (B_tiles, L_tiles).  L is the (last) reduction axis."""
    k = pl.program_id(1)
    nk = pl.num_programs(1)

    # --- init running-max accumulator on the first L step -------------------
    @pl.when(k == 0)
    def _init():
        pooled_acc[...] = jnp.full_like(pooled_acc, -jnp.inf)

    # --- pool this L tile (bf16 compares; exact for max) ---------------------
    xb = x_ref[...]
    if l_total % l_tile != 0:
        # Ragged last tile: pad with the dtype's most-negative value so padded
        # lanes can never win the max.
        gidx = jax.lax.broadcasted_iota(jnp.int32, xb.shape, reduce_axis) + k * l_tile
        xb = jnp.where(gidx < l_total, xb, jnp.finfo(xb.dtype).min)
    part = jnp.max(xb, axis=reduce_axis).astype(jnp.float32)     # (B_tile, C)
    pooled_acc[...] = jnp.maximum(pooled_acc[...], part)

    # --- MLP head only once, on the last L step ------------------------------
    @pl.when(k == nk - 1)
    def _head():
        pooled = pooled_acc[...]                                  # (B_tile, C) f32
        h1 = jnp.dot(pooled, w1_ref[...], preferred_element_type=jnp.float32) + b1_ref[...]
        h1 = _silu(h1)
        h2 = jnp.dot(h1, w2_ref[...], preferred_element_type=jnp.float32) + b2_ref[...]
        h2 = _silu(h2)
        out = jnp.dot(h2, w3_ref[...], preferred_element_type=jnp.float32) + b3_ref[...]
        o_ref[...] = out.astype(o_ref.dtype)


def _choose_l_tile(b_tile, C, L, itemsize, channels_last, target_bytes=2 << 20):
    """Largest L tile with x block <= ~2 MiB (so 2x double-buffering stays far
    under the scoped VMEM limit on every generation, incl. v7x's 64 MiB)."""
    granule = 8 if channels_last else 128   # (8,128) tiling rule on the tiled axis
    fit = target_bytes // max(1, b_tile * C * itemsize)
    l_tile = max(granule, (fit // granule) * granule)
    if l_tile >= L:
        return L                            # single step, no masking needed
    return l_tile


def head_layer_forward(x, params, *, stream_dtype=jnp.bfloat16,
                       l_tile=None, b_tile=None, interpret=False):
    """x: (B, final_ch, L) float32 (PyTorch NCL).  params: w1,b1,w2,b2,w3,b3."""
    B, C, L = x.shape
    w1, b1 = params["w1"], params["b1"]
    w2, b2 = params["w2"], params["b2"]
    w3, b3 = params["w3"], params["b3"]
    out_size = w3.shape[1]
    h1d, h2d = w1.shape[1], w2.shape[1]

    # Stream the (only) large operand in bf16: halves HBM bytes; the pool is
    # exact in bf16 (only the cast rounds, ~3 decimal digits).
    x = x.astype(stream_dtype)
    itemsize = jnp.dtype(stream_dtype).itemsize

    # Lane-dense layout choice: keep the bigger of (C, L) in the last dim.
    channels_last = (C >= 128) and (C % 128 == 0)
    if channels_last:
        x = jnp.transpose(x, (0, 2, 1))     # (B, L, C): pool over sublanes (axis 1)
        reduce_axis = 1
    else:
        reduce_axis = 2                     # (B, C, L): pool over lanes (axis 2)

    # Keep the full batch as the matmul M dimension (B is tiny vs the MXU).
    if b_tile is None:
        b_tile = B
    assert B % b_tile == 0 and (b_tile == B or b_tile % 8 == 0), "bad b_tile"

    if l_tile is None:
        l_tile = _choose_l_tile(b_tile, C, L, itemsize, channels_last)
    granule = 8 if channels_last else 128
    assert l_tile == L or l_tile % granule == 0, "bad l_tile"

    nb = B // b_tile
    nk = pl.cdiv(L, l_tile)

    if channels_last:
        x_block = (b_tile, l_tile, C)
        x_map = lambda b, k: (b, k, 0)
    else:
        x_block = (b_tile, C, l_tile)
        x_map = lambda b, k: (b, 0, k)

    # Weights / biases: constant index_map -> DMA'd once, VMEM-resident.
    def const(arr):
        nd = arr.ndim
        return pl.BlockSpec(arr.shape, lambda b, k, _nd=nd: (0,) * _nd)

    kernel = functools.partial(_head_layer_kernel, reduce_axis=reduce_axis,
                               l_total=L, l_tile=l_tile)

    # Cost hint so XLA can overlap neighbouring ops with this mem-bound kernel.
    flops = 2 * B * (C * h1d + h1d * h2d + h2d * out_size) + 2 * B * (h1d + h2d)
    transcendentals = B * (h1d + h2d)       # sigmoid exps
    bytes_accessed = (x.size * itemsize
                      + sum(int(a.size) * a.dtype.itemsize
                            for a in (w1, b1, w2, b2, w3, b3))
                      + B * out_size * 4)

    x_block_bytes = b_tile * C * l_tile * itemsize
    vmem_limit = int(min(96 << 20, max(32 << 20, 3 * x_block_bytes + (4 << 20))))

    out = pl.pallas_call(
        kernel,
        out_shape=jax.ShapeDtypeStruct((B, out_size), jnp.float32),
        grid_spec=pltpu.PrefetchScalarGridSpec(
            num_scalar_prefetch=0,
            grid=(nb, nk),                                   # reduction axis last
            in_specs=[
                pl.BlockSpec(x_block, x_map),
                const(w1), const(b1),
                const(w2), const(b2),
                const(w3), const(b3),
            ],
            out_specs=pl.BlockSpec((b_tile, out_size), lambda b, k: (b, 0)),
            scratch_shapes=[pltpu.VMEM((b_tile, C), jnp.float32)],
        ),
        compiler_params=pltpu.CompilerParams(
            dimension_semantics=("parallel", "arbitrary"),
            vmem_limit_bytes=vmem_limit),
        cost_estimate=pl.CostEstimate(flops=flops,
                                      transcendentals=transcendentals,
                                      bytes_accessed=bytes_accessed),
        interpret=interpret,
    )(x, w1, b1, w2, b2, w3, b3)

    # torch.squeeze(out): drops size-1 dims (no-op when B>1 and out_size>1).
    return jnp.squeeze(out)


def make_params(final_ch, out_size, key):
    """Shapes mirror HeadLayer.__init__ with pooling='max' (len(poolers)=1).
    Linear weights stored as (in_features, out_features)."""
    c = final_ch
    h1, h2 = c // 2, c // 4
    k1, k2, k3, k4, k5, k6 = jax.random.split(key, 6)
    return {
        "w1": jax.random.normal(k1, (c, h1), jnp.float32) * 0.1,
        "b1": jax.random.normal(k2, (1, h1), jnp.float32) * 0.1,
        "w2": jax.random.normal(k3, (h1, h2), jnp.float32) * 0.1,
        "b2": jax.random.normal(k4, (1, h2), jnp.float32) * 0.1,
        "w3": jax.random.normal(k5, (h2, out_size), jnp.float32) * 0.1,
        "b3": jax.random.normal(k6, (1, out_size), jnp.float32) * 0.1,
    }


def reference_forward(x, params):
    """Pure-JAX f32 reference matching the PyTorch eval-mode forward."""
    pooled = jnp.max(x, axis=-1)                          # AdaptiveMaxPool1d(1)+squeeze
    h1 = _silu(pooled @ params["w1"] + params["b1"])      # Linear + Dropout(eval) + SiLU
    h2 = _silu(h1 @ params["w2"] + params["b2"])
    return jnp.squeeze(h2 @ params["w3"] + params["b3"])


def reference_forward_matched(x, params, stream_dtype=jnp.bfloat16):
    """Same math as the kernel (bf16 streaming of x, f32 MLP)."""
    pooled = jnp.max(x.astype(stream_dtype), axis=-1).astype(jnp.float32)
    h1 = _silu(pooled @ params["w1"] + params["b1"])
    h2 = _silu(h1 @ params["w2"] + params["b2"])
    return jnp.squeeze(h2 @ params["w3"] + params["b3"])


if __name__ == "__main__":
    root = jax.random.PRNGKey(0)

    # (B, final_ch, L, out_size, l_tile_override)
    configs = [
        (2, 32, 16, 8, None),    # tiny: single L step, channels-first layout
        (2, 32, 320, 8, 128),    # channels-first, 3 L tiles, ragged last tile (mask path)
        (4, 128, 640, 8, 256),   # channels-last (C>=128), 3 L tiles, ragged last tile
    ]

    for i, (B, C, L, out_size, lt) in enumerate(configs):
        kx, kp = jax.random.split(jax.random.fold_in(root, i))
        x = jax.random.normal(kx, (B, C, L), jnp.float32)
        params = make_params(C, out_size, kp)

        y = jax.block_until_ready(head_layer_forward(x, params, l_tile=lt))

        y_match = reference_forward_matched(x, params)
        y_f32 = reference_forward(x, params)

        assert y.shape == (B, out_size), (i, y.shape)
        assert jnp.allclose(y, y_match, atol=2e-2, rtol=2e-2), f"cfg{i}: mismatch vs matched ref"
        # bf16 streaming rounds x (~3 decimal digits) -> looser check vs pure-f32 semantics.
        assert jnp.allclose(y, y_f32, atol=6e-2, rtol=6e-2), f"cfg{i}: mismatch vs f32 ref"

    print("KERNEL_OK")
</pallas_src>

<mosaic_0001>
module attributes {stable_mosaic.version = 11 : i64} {
  func.func @_head_layer_kernel(%arg0: i32, %arg1: i32, %arg2: memref<2x32x16xbf16, #tpu.memory_space<vmem>>, %arg3: memref<32x16xf32, #tpu.memory_space<vmem>>, %arg4: memref<1x16xf32, #tpu.memory_space<vmem>>, %arg5: memref<16x8xf32, #tpu.memory_space<vmem>>, %arg6: memref<1x8xf32, #tpu.memory_space<vmem>>, %arg7: memref<8x8xf32, #tpu.memory_space<vmem>>, %arg8: memref<1x8xf32, #tpu.memory_space<vmem>>, %arg9: memref<2x8xf32, #tpu.memory_space<vmem>>, %arg10: memref<2x32xf32, #tpu.memory_space<vmem>>) attributes {dimension_semantics = [#tpu.dimension_semantics<parallel>, #tpu.dimension_semantics<arbitrary>], iteration_bounds = array<i64: 1, 1>, scalar_prefetch = 0 : i64, scratch_operands = 1 : i64, tpu.core_type = #tpu.core_type<tc>, window_params = [{transform_indices = @transform_0, window_bounds = array<i64: 2, 32, 16>}, {pipeline_mode = #tpu.pipeline_mode<synchronous>, transform_indices = @transform_1, window_bounds = array<i64: 32, 16>}, {pipeline_mode = #tpu.pipeline_mode<synchronous>, transform_indices = @transform_2, window_bounds = array<i64: 1, 16>}, {pipeline_mode = #tpu.pipeline_mode<synchronous>, transform_indices = @transform_3, window_bounds = array<i64: 16, 8>}, {pipeline_mode = #tpu.pipeline_mode<synchronous>, transform_indices = @transform_4, window_bounds = array<i64: 1, 8>}, {pipeline_mode = #tpu.pipeline_mode<synchronous>, transform_indices = @transform_5, window_bounds = array<i64: 8, 8>}, {pipeline_mode = #tpu.pipeline_mode<synchronous>, transform_indices = @transform_6, window_bounds = array<i64: 1, 8>}, {transform_indices = @transform_7, window_bounds = array<i64: 2, 8>}]} {
    %c0_i32 = arith.constant 0 : i32
    %0 = arith.cmpi eq, %arg1, %c0_i32 : i32
    %1 = arith.extui %0 : i1 to i32
    %c0_i32_0 = arith.constant 0 : i32
    %2 = arith.cmpi ne, %1, %c0_i32_0 : i32
    scf.if %2 {
      %cst_9 = arith.constant 0xFF800000 : f32
      %12 = vector.broadcast %cst_9 : f32 to vector<2x32xf32>
      %c0_10 = arith.constant 0 : index
      %c0_11 = arith.constant 0 : index
      %13 = vector.load %arg10[%c0_10, %c0_11] : memref<2x32xf32, #tpu.memory_space<vmem>>, vector<2x32xf32>
      tpu.vector_store %arg10[%c0_10, %c0_11], %12 {strides = array<i32>} : memref<2x32xf32, #tpu.memory_space<vmem>>, vector<2x32xf32>,
    } else {
    }
    %c0 = arith.constant 0 : index
    %c0_1 = arith.constant 0 : index
    %c0_2 = arith.constant 0 : index
    %3 = vector.load %arg2[%c0, %c0_1, %c0_2] : memref<2x32x16xbf16, #tpu.memory_space<vmem>>, vector<2x32x16xbf16>
    %cst = arith.constant dense<0xFF80> : vector<2x32xbf16>
    %4 = vector.multi_reduction <maximumf>, %3, %cst [2] : vector<2x32x16xbf16> to vector<2x32xbf16>
    %5 = arith.extf %4 : vector<2x32xbf16> to vector<2x32xf32>
    %c0_3 = arith.constant 0 : index
    %c0_4 = arith.constant 0 : index
    %6 = vector.load %arg10[%c0_3, %c0_4] : memref<2x32xf32, #tpu.memory_space<vmem>>, vector<2x32xf32>
    %7 = arith.maximumf %6, %5 : vector<2x32xf32>
    %c0_5 = arith.constant 0 : index
    %c0_6 = arith.constant 0 : index
    %8 = vector.load %arg10[%c0_5, %c0_6] : memref<2x32xf32, #tpu.memory_space<vmem>>, vector<2x32xf32>
    tpu.vector_store %arg10[%c0_5, %c0_6], %7 {strides = array<i32>} : memref<2x32xf32, #tpu.memory_space<vmem>>, vector<2x32xf32>,
    %c0_i32_7 = arith.constant 0 : i32
    %9 = arith.cmpi eq, %arg1, %c0_i32_7 : i32
    %10 = arith.extui %9 : i1 to i32
    %c0_i32_8 = arith.constant 0 : i32
    %11 = arith.cmpi ne, %10, %c0_i32_8 : i32
    scf.if %11 {
      %c0_9 = arith.constant 0 : index
      %c0_10 = arith.constant 0 : index
      %12 = vector.load %arg10[%c0_9, %c0_10] : memref<2x32xf32, #tpu.memory_space<vmem>>, vector<2x32xf32>
      %c0_11 = arith.constant 0 : index
      %c0_12 = arith.constant 0 : index
      %13 = vector.load %arg3[%c0_11, %c0_12] : memref<32x16xf32, #tpu.memory_space<vmem>>, vector<32x16xf32>
      %cst_13 = arith.constant dense<0.000000e+00> : vector<2x16xf32>
      %14 = tpu.matmul %12, %13, %cst_13 {dimension_numbers = #tpu.dot_dimension_numbers<[1], [0], [0], [1], [0, 0, 1, 1], [], []>} : vector<2x32xf32>, vector<32x16xf32>, vector<2x16xf32> -> vector<2x16xf32>
      %c0_14 = arith.constant 0 : index
      %c0_15 = arith.constant 0 : index
      %15 = vector.load %arg4[%c0_14, %c0_15] : memref<1x16xf32, #tpu.memory_space<vmem>>, vector<1x16xf32>
      %16 = vector.broadcast %15 : vector<1x16xf32> to vector<2x16xf32>
      %17 = arith.addf %14, %16 : vector<2x16xf32>
      %18 = arith.negf %17 : vector<2x16xf32>
      %19 = math.exp %18 : vector<2x16xf32>
      %cst_16 = arith.constant 1.000000e+00 : f32
      %20 = vector.broadcast %cst_16 : f32 to vector<2x16xf32>
      %21 = arith.addf %20, %19 : vector<2x16xf32>
      %22 = arith.divf %20, %21 : vector<2x16xf32>
      %23 = arith.mulf %17, %22 : vector<2x16xf32>
      %c0_17 = arith.constant 0 : index
      %c0_18 = arith.constant 0 : index
      %24 = vector.load %arg5[%c0_17, %c0_18] : memref<16x8xf32, #tpu.memory_space<vmem>>, vector<16x8xf32>
      %cst_19 = arith.constant dense<0.000000e+00> : vector<2x8xf32>
      %25 = tpu.matmul %23, %24, %cst_19 {dimension_numbers = #tpu.dot_dimension_numbers<[1], [0], [0], [1], [0, 0, 1, 1], [], []>} : vector<2x16xf32>, vector<16x8xf32>, vector<2x8xf32> -> vector<2x8xf32>
      %c0_20 = arith.constant 0 : index
      %c0_21 = arith.constant 0 : index
      %26 = vector.load %arg6[%c0_20, %c0_21] : memref<1x8xf32, #tpu.memory_space<vmem>>, vector<1x8xf32>
      %27 = vector.broadcast %26 : vector<1x8xf32> to vector<2x8xf32>
      %28 = arith.addf %25, %27 : vector<2x8xf32>
      %29 = arith.negf %28 : vector<2x8xf32>
      %30 = math.exp %29 : vector<2x8xf32>
      %cst_22 = arith.constant 1.000000e+00 : f32
      %31 = vector.broadcast %cst_22 : f32 to vector<2x8xf32>
      %32 = arith.addf %31, %30 : vector<2x8xf32>
      %33 = arith.divf %31, %32 : vector<2x8xf32>
      %34 = arith.mulf %28, %33 : vector<2x8xf32>
      %c0_23 = arith.constant 0 : index
      %c0_24 = arith.constant 0 : index
      %35 = vector.load %arg7[%c0_23, %c0_24] : memref<8x8xf32, #tpu.memory_space<vmem>>, vector<8x8xf32>
      %cst_25 = arith.constant dense<0.000000e+00> : vector<2x8xf32>
      %36 = tpu.matmul %34, %35, %cst_25 {dimension_numbers = #tpu.dot_dimension_numbers<[1], [0], [0], [1], [0, 0, 1, 1], [], []>} : vector<2x8xf32>, vector<8x8xf32>, vector<2x8xf32> -> vector<2x8xf32>
      %c0_26 = arith.constant 0 : index
      %c0_27 = arith.constant 0 : index
      %37 = vector.load %arg8[%c0_26, %c0_27] : memref<1x8xf32, #tpu.memory_space<vmem>>, vector<1x8xf32>
      %38 = vector.broadcast %37 : vector<1x8xf32> to vector<2x8xf32>
      %39 = arith.addf %36, %38 : vector<2x8xf32>
      %c0_28 = arith.constant 0 : index
      %c0_29 = arith.constant 0 : index
      %40 = vector.load %arg9[%c0_28, %c0_29] : memref<2x8xf32, #tpu.memory_space<vmem>>, vector<2x8xf32>
      tpu.vector_store %arg9[%c0_28, %c0_29], %39 {strides = array<i32>} : memref<2x8xf32, #tpu.memory_space<vmem>>, vector<2x8xf32>,
    } else {
    }
    return
  }
  func.func @transform_0(%arg0: i32, %arg1: i32) -> (i32, i32, i32) {
    %c0_i32 = arith.constant 0 : i32
    %c0_i32_0 = arith.constant 0 : i32
    return %arg0, %c0_i32, %arg1 : i32, i32, i32
  }
  func.func @transform_1(%arg0: i32, %arg1: i32) -> (i32, i32) {
    %c0_i32 = arith.constant 0 : i32
    %c0_i32_0 = arith.constant 0 : i32
    %c0_i32_1 = arith.constant 0 : i32
    return %c0_i32, %c0_i32_0 : i32, i32
  }
  func.func @transform_2(%arg0: i32, %arg1: i32) -> (i32, i32) {
    %c0_i32 = arith.constant 0 : i32
    %c0_i32_0 = arith.constant 0 : i32
    %c0_i32_1 = arith.constant 0 : i32
    return %c0_i32, %c0_i32_0 : i32, i32
  }
  func.func @transform_3(%arg0: i32, %arg1: i32) -> (i32, i32) {
    %c0_i32 = arith.constant 0 : i32
    %c0_i32_0 = arith.constant 0 : i32
    %c0_i32_1 = arith.constant 0 : i32
    return %c0_i32, %c0_i32_0 : i32, i32
  }
  func.func @transform_4(%arg0: i32, %arg1: i32) -> (i32, i32) {
    %c0_i32 = arith.constant 0 : i32
    %c0_i32_0 = arith.constant 0 : i32
    %c0_i32_1 = arith.constant 0 : i32
    return %c0_i32, %c0_i32_0 : i32, i32
  }
  func.func @transform_5(%arg0: i32, %arg1: i32) -> (i32, i32) {
    %c0_i32 = arith.constant 0 : i32
    %c0_i32_0 = arith.constant 0 : i32
    %c0_i32_1 = arith.constant 0 : i32
    return %c0_i32, %c0_i32_0 : i32, i32
  }
  func.func @transform_6(%arg0: i32, %arg1: i32) -> (i32, i32) {
    %c0_i32 = arith.constant 0 : i32
    %c0_i32_0 = arith.constant 0 : i32
    %c0_i32_1 = arith.constant 0 : i32
    return %c0_i32, %c0_i32_0 : i32, i32
  }
  func.func @transform_7(%arg0: i32, %arg1: i32) -> (i32, i32) {
    %c0_i32 = arith.constant 0 : i32
    %c0_i32_0 = arith.constant 0 : i32
    return %arg0, %c0_i32 : i32, i32
  }
}

</mosaic_0001>

<llo_original>
// kernel: tpu_custom_call.1
$region0: #{tpu_custom_call.1}
  #allocation0 [shape = 'u32[]', space=smem, size = 0x4, offset = 0x4, fixed_abs, tag = 'smem constant byte address 0x4 - core index']
  #allocation1 [shape = 'u32[72,128]{1,0:T(1,128)}', space=vmem, size = 0x9000, scoped, tag = 'internal scratch']
  #allocation2 [shape = 'f32[2,32]{1,0:T(2,128)}', space=vmem, size = 0x400, scoped, tag = 'scratch operand']
  %s0 = inlined_call_operand.vmem [shape: bf16[2,32,16], index: 0, kind: input, shape index: {}]
  %s1 = inlined_call_operand.vmem [shape: f32[32,16], index: 1, kind: input, shape index: {}]
  %s2 = inlined_call_operand.vmem [shape: f32[1,16], index: 2, kind: input, shape index: {}]
  %s3 = inlined_call_operand.vmem [shape: f32[16,8], index: 3, kind: input, shape index: {}]
  %s4 = inlined_call_operand.vmem [shape: f32[1,8], index: 4, kind: input, shape index: {}]
  %s5 = inlined_call_operand.vmem [shape: f32[8,8], index: 5, kind: input, shape index: {}]
  %s6 = inlined_call_operand.vmem [shape: f32[1,8], index: 6, kind: input, shape index: {}]
  %s7 = inlined_call_operand.hbm [shape: f32[2,8], index: 7, kind: output, shape index: {}]
  %s8 = sld [smem:[#allocation0]]
  $region46: #{tpu_custom_call.1} parent=0
    _
  %s10 = ssub.s32 1, %s8
  %s11 = scalar_select 0, %s10, %s8
  $region1: #{tpu_custom_call.1} parent=0
    #allocation3 [shape = 'u8[1024]{0}', space=vmem, size = 0x400, scoped, tag = 'output window, operand 0, single buffered']
    #allocation4 [shape = 's32[1]{0}', space=sflag, size = 0x4, scoped, tag = 'scoped memory for tpu_custom_call.1']
    %12 = vsyncpa [#allocation4], 0
    // Predicated region
    $region2: #{tpu_custom_call.1} parent=1 // pred_check
      _
    $region3: #{tpu_custom_call.1} parent=1 // pred_check_branch
      %14 = sbr.rel (0) target = $region5
    $region4: #{tpu_custom_call.1} parent=1 // pred_region
      _
    $region5: #{tpu_custom_call.1} parent=1 // pred_fallthru
      _
    // Predicated region
    $region6: #{tpu_custom_call.1} parent=1 // pred_check
      _
    $region7: #{tpu_custom_call.1} parent=1 // pred_check_branch
      %16 = sbr.rel (0) target = $region9
    $region8: #{tpu_custom_call.1} parent=1 // pred_region
      _
    $region9: #{tpu_custom_call.1} parent=1 // pred_fallthru
      _
    // Predicated region
    $region10: #{tpu_custom_call.1} parent=1 // pred_check
      _
    $region11: #{tpu_custom_call.1} parent=1 // pred_check_branch
      %18 = sbr.rel (0) target = $region13
    $region12: #{tpu_custom_call.1} parent=1 // pred_region
      _
    $region13: #{tpu_custom_call.1} parent=1 // pred_fallthru
      _
    // Predicated region
    $region14: #{tpu_custom_call.1} parent=1 // pred_check
      _
    $region15: #{tpu_custom_call.1} parent=1 // pred_check_branch
      %20 = sbr.rel (0) target = $region17
    $region16: #{tpu_custom_call.1} parent=1 // pred_region
      _
    $region17: #{tpu_custom_call.1} parent=1 // pred_fallthru
      _
    // Predicated region
    $region18: #{tpu_custom_call.1} parent=1 // pred_check
      _
    $region19: #{tpu_custom_call.1} parent=1 // pred_check_branch
      %22 = sbr.rel (0) target = $region21
    $region20: #{tpu_custom_call.1} parent=1 // pred_region
      _
    $region21: #{tpu_custom_call.1} parent=1 // pred_fallthru
      _
    // Predicated region
    $region22: #{tpu_custom_call.1} parent=1 // pred_check
      _
    $region23: #{tpu_custom_call.1} parent=1 // pred_check_branch
      %24 = sbr.rel (0) target = $region25
    $region24: #{tpu_custom_call.1} parent=1 // pred_region
      _
    $region25: #{tpu_custom_call.1} parent=1 // pred_fallthru
      _
    // Predicated region
    $region26: #{tpu_custom_call.1} parent=1 // pred_check
      _
    $region27: #{tpu_custom_call.1} parent=1 // pred_check_branch
      %26 = sbr.rel (0) target = $region29
    $region28: #{tpu_custom_call.1} parent=1 // pred_region
      _
    $region29: #{tpu_custom_call.1} parent=1 // pred_fallthru
      _
    %p27 = scmp.eq.s32.totalorder 0, 0
    // Predicated region
    $region30: #{tpu_custom_call.1} parent=1 // pred_check
      %p28 = pneg %p27
    $region31: #{tpu_custom_call.1} parent=1 // pred_check_branch
      %30 = sbr.rel (%p28) target = $region33
    $region32: #{tpu_custom_call.1} parent=1 // pred_region
      %vm31 = vcmask 254976
      %32 = vst.msk [vmem:[#allocation2] sm:$0x3] %vm31, -inf
    $region33: #{tpu_custom_call.1} parent=1 // pred_fallthru
      _
    %v33 = vld [vmem:[%s0] sm:$0xf]
    %v34 = vld [vmem:[%s0 + $0x4] sm:$0xf]
    %v35 = vld [vmem:[%s0 + $0x8] sm:$0xf]
    %v36 = vld [vmem:[%s0 + $0xc] sm:$0xf]
    %v37 = vld [vmem:[%s0 + $0x10] sm:$0xf]
    %v38 = vld [vmem:[%s0 + $0x14] sm:$0xf]
    %v39 = vld [vmem:[%s0 + $0x18] sm:$0xf]
    %v40 = vld [vmem:[%s0 + $0x1c] sm:$0xf]
    %v41 = vunpack.c.l.bf16 %v33
    %v42 = vunpack.c.l.bf16 %v34
    %v43 = vunpack.c.l.bf16 %v35
    %v44 = vunpack.c.l.bf16 %v36
    %v45 = vunpack.c.l.bf16 %v37
    %v46 = vunpack.c.l.bf16 %v38
    %v47 = vunpack.c.l.bf16 %v39
    %v48 = vunpack.c.l.bf16 %v40
    %vm49 = vcmask 130048
    %v50 = vsel %vm49, %v41, -inf
    %51 = vmax.xlane.f32.xlu0 %v50
    %v52 = vpop.xlane.xlu0 %51
    %v53 = vsel %vm49, %v42, -inf
    %54 = vmax.xlane.f32.xlu0 %v53
    %v55 = vpop.xlane.xlu0 %54
    %v56 = vsel %vm49, %v43, -inf
    %57 = vmax.xlane.f32.xlu0 %v56
    %v58 = vpop.xlane.xlu0 %57
    %v59 = vsel %vm49, %v44, -inf
    %60 = vmax.xlane.f32.xlu0 %v59
    %v61 = vpop.xlane.xlu0 %60
    %v62 = vsel %vm49, %v45, -inf
    %63 = vmax.xlane.f32.xlu0 %v62
    %v64 = vpop.xlane.xlu0 %63
    %v65 = vsel %vm49, %v46, -inf
    %66 = vmax.xlane.f32.xlu0 %v65
    %v67 = vpop.xlane.xlu0 %66
    %v68 = vsel %vm49, %v47, -inf
    %69 = vmax.xlane.f32.xlu0 %v68
    %v70 = vpop.xlane.xlu0 %69
    %v71 = vsel %vm49, %v48, -inf
    %72 = vmax.xlane.f32.xlu0 %v71
    %v73 = vpop.xlane.xlu0 %72
    %v74 = vpack.c.bf16 %v52, %v52
    %v75 = vpack.c.bf16 %v55, %v55
    %v76 = vpack.c.bf16 %v58, %v58
    %v77 = vpack.c.bf16 %v61, %v61
    %v78 = vpack.c.bf16 %v64, %v64
    %v79 = vpack.c.bf16 %v67, %v67
    %v80 = vpack.c.bf16 %v70, %v70
    %v81 = vpack.c.bf16 %v73, %v73
    %v82 = vunpack.c.l.bf16 %v74
    %v83 = vunpack.c.l.bf16 %v75
    %v84 = vunpack.c.l.bf16 %v76
    %v85 = vunpack.c.l.bf16 %v77
    %v86 = vunpack.c.l.bf16 %v78
    %v87 = vunpack.c.l.bf16 %v79
    %v88 = vunpack.c.l.bf16 %v80
    %v89 = vunpack.c.l.bf16 %v81
    %v90 = vld [vmem:[#allocation2] sm:$0x3]
    %v99 = vlaneseq
    %v100 = vand.u32 %v99, 127
    %v101 = vperm.slane %v82, %v100
    %v102 = vadd.s32 %v100, 4294967288
    %v103 = vperm.slane %v83, %v102
    %vm104 = vcmask 130112
    %v105 = vsel %vm104, %v103, %v101
    %v106 = vadd.s32 %v100, 4294967280
    %v107 = vperm.slane %v84, %v106
    %vm108 = vcmask 195712
    %v109 = vsel %vm108, %v107, %v105
    %v110 = vadd.s32 %v100, 4294967272
    %v111 = vperm.slane %v85, %v110
    %vm112 = vcmask 261312
    %v113 = vsel %vm112, %v111, %v109
    %v114 = vperm.slane %v86, %v100
    %v115 = vperm.slane %v87, %v102
    %v116 = vsel %vm104, %v115, %v114
    %v117 = vperm.slane %v88, %v106
    %v118 = vsel %vm108, %v117, %v116
    %v119 = vperm.slane %v89, %v110
    %v120 = vsel %vm112, %v119, %v118
    %vm121 = vcmask 1041409
    %v122 = vsel %vm121, %v120, %v113
    %v124 = vmax.f32 %v90, %v122
    %vm125 = vcmask 254976
    %126 = vst.msk [vmem:[#allocation2] sm:$0x3] %vm125, %v124
    // Predicated region
    $region34: #{tpu_custom_call.1} parent=1 // pred_check
      %p127 = pneg %p27
    $region35: #{tpu_custom_call.1} parent=1 // pred_check_branch
      %129 = sbr.rel (%p127) target = $region37
    $region36: #{tpu_custom_call.1} parent=1 // pred_region
      %v130 = vld [vmem:[#allocation2] sm:$0x3]
      %v131 = vld [vmem:[%s1] sm:$0xff]
      %v132 = vld [vmem:[%s1 + $0x8] sm:$0xff]
      %v133 = vld [vmem:[%s1 + $0x10] sm:$0xff]
      %v134 = vld [vmem:[%s1 + $0x18] sm:$0xff]
      %v135 = vld [vmem:[%s2] sm:$0x1]
      %v137 = vperm.slane %v135, 0
      %vm139 = vcmask 261120
      %v141 = vsel %vm139, %v130, 0
      %143 = vmatpush.msra.mxu0 0.0
      %144 = vmatpush.msra.mxu0 0.0
      %145 = vmatpush.msra.mxu0 0.0
      %146 = vmatpush.msra.mxu0 0.0
      %147 = vmatpush.msra.mxu0 0.0
      %148 = vmatpush.msra.mxu0 0.0
      %149 = vmatpush.msra.mxu0 0.0
      %150 = vmatpush.msra.mxu0 0.0
      %151 = vmatpush.msra.mxu0 0.0
      %152 = vmatpush.msra.mxu0 0.0
      %153 = vmatpush.msra.mxu0 0.0
      %154 = vmatpush.msra.mxu0 0.0
      %155 = vmatpush.msra.mxu0 %v134
      %156 = vmatpush.msra.mxu0 %v133
      %157 = vmatpush.msra.mxu0 %v132
      %158 = vmatpush.msra.mxu0 %v131
      %159 = vmatmul.f32.gmra.mxu0 %v141
      %v160 = vpop.f32.mrf.mxu0
      %v161 = vadd.f32 %v137, %v160
      %162 = vdwg.mxu0
      %v163 = vxor.u32 %v161, 2147483648
      %v164 = vmul.f32 %v163, 1.442695
      %v165 = vpow.pop %v164
      %v166 = vadd.f32 %v165, 1.0
      %v167 = vrcp.pop %v166
      %v168 = vmul.f32 %v166, %v167
      %v169 = vsub.f32 1.0, %v168
      %v170 = vmul.f32 %v167, %v169
      %v171 = vadd.f32 %v167, %v170
      %vm172 = vweird.f32 %v166
      %vm173 = vweird.f32 %v167
      %vm174 = vmor %vm172, %vm173
      %v175 = vsel %vm174, %v167, %v171
      %v176 = vand.u32 2147483647, %v166
      %vm177 = vcmp.eq.f32.partialorder %v176, 8.507059e+37
      %v178 = vand.u32 %v166, 2147483648
      %v179 = vor.u32 1.1754944e-38, %v178
      %v180 = vsel %vm177, %v179, %v175
      %v181 = vmul.f32 1.0, %v180
      %v182 = vmul.f32 %v161, %v181
      %v183 = vld [vmem:[%s3] sm:$0xff]
      %v184 = vld [vmem:[%s3 + $0x8] sm:$0xff]
      %v185 = vld [vmem:[%s4] sm:$0x1]
      %v187 = vperm.slane %v185, 0
      %v190 = vsel %vm49, %v182, 0
      %192 = vmatpush.msra.mxu0 0.0
      %193 = vmatpush.msra.mxu0 0.0
      %194 = vmatpush.msra.mxu0 0.0
      %195 = vmatpush.msra.mxu0 0.0
      %196 = vmatpush.msra.mxu0 0.0
      %197 = vmatpush.msra.mxu0 0.0
      %198 = vmatpush.msra.mxu0 0.0
      %199 = vmatpush.msra.mxu0 0.0
      %200 = vmatpush.msra.mxu0 0.0
      %201 = vmatpush.msra.mxu0 0.0
      %202 = vmatpush.msra.mxu0 0.0
      %203 = vmatpush.msra.mxu0 0.0
      %204 = vmatpush.msra.mxu0 0.0
      %205 = vmatpush.msra.mxu0 0.0
      %206 = vmatpush.msra.mxu0 %v184
      %207 = vmatpush.msra.mxu0 %v183
      %208 = vmatmul.f32.gmra.mxu0 %v190
      %v209 = vpop.f32.mrf.mxu0
      %v210 = vadd.f32 %v187, %v209
      %211 = vdwg.mxu0
      %v212 = vxor.u32 %v210, 2147483648
      %v213 = vmul.f32 %v212, 1.442695
      %v214 = vpow.pop %v213
      %v215 = vadd.f32 %v214, 1.0
      %v216 = vrcp.pop %v215
      %v217 = vmul.f32 %v215, %v216
      %v218 = vsub.f32 1.0, %v217
      %v219 = vmul.f32 %v216, %v218
      %v220 = vadd.f32 %v216, %v219
      %vm221 = vweird.f32 %v215
      %vm222 = vweird.f32 %v216
      %vm223 = vmor %vm221, %vm222
      %v224 = vsel %vm223, %v216, %v220
      %v225 = vand.u32 2147483647, %v215
      %vm226 = vcmp.eq.f32.partialorder %v225, 8.507059e+37
      %v227 = vand.u32 %v215, 2147483648
      %v228 = vor.u32 1.1754944e-38, %v227
      %v229 = vsel %vm226, %v228, %v224
      %v230 = vmul.f32 1.0, %v229
      %v231 = vmul.f32 %v210, %v230
      %v232 = vld [vmem:[%s5] sm:$0xff]
      %v233 = vld [vmem:[%s6] sm:$0x1]
      %v235 = vperm.slane %v233, 0
      %vm237 = vcmask 64512
      %v239 = vsel %vm237, %v231, 0
      %241 = vmatpush.msra.mxu0 0.0
      %242 = vmatpush.msra.mxu0 0.0
      %243 = vmatpush.msra.mxu0 0.0
      %244 = vmatpush.msra.mxu0 0.0
      %245 = vmatpush.msra.mxu0 0.0
      %246 = vmatpush.msra.mxu0 0.0
      %247 = vmatpush.msra.mxu0 0.0
      %248 = vmatpush.msra.mxu0 0.0
      %249 = vmatpush.msra.mxu0 0.0
      %250 = vmatpush.msra.mxu0 0.0
      %251 = vmatpush.msra.mxu0 0.0
      %252 = vmatpush.msra.mxu0 0.0
      %253 = vmatpush.msra.mxu0 0.0
      %254 = vmatpush.msra.mxu0 0.0
      %255 = vmatpush.msra.mxu0 0.0
      %256 = vmatpush.msra.mxu0 %v232
      %257 = vmatmul.f32.gmra.mxu0 %v239
      %v258 = vpop.f32.mrf.mxu0
      %v259 = vadd.f32 %v235, %v258
      %260 = vdwg.mxu0
      %vm261 = vcmask 58368
      %262 = vst.msk [vmem:[#allocation3] sm:$0x3] %vm261, %v259
    $region37: #{tpu_custom_call.1} parent=1 // pred_fallthru
      _
    // Predicated region
    $region38: #{tpu_custom_call.1} parent=1 // pred_check
      _
    $region39: #{tpu_custom_call.1} parent=1 // pred_check_branch
      %264 = sbr.rel (0) target = $region41
    $region40: #{tpu_custom_call.1} parent=1 // pred_region
      %266 = vsyncadd [#allocation4], 0
      %s268 = sshll.u32 [#allocation3], 4
      %s269 = int_to_ptr.vmem [resolvable:$true] %s268
      %s270 = sshll.u32 %s7, 4
      %s271 = int_to_ptr.hbm [resolvable:$true] %s270
      %273 = dma.vmem_to_hbm [thread:$0]  %s269, 32, %s271, [#allocation4]
    $region41: #{tpu_custom_call.1} parent=1 // pred_fallthru
      _
    // Predicated region
    $region42: #{tpu_custom_call.1} parent=1 // pred_check
      _
    $region43: #{tpu_custom_call.1} parent=1 // pred_check_branch
      %275 = sbr.rel (0) target = $region45
    $region44: #{tpu_custom_call.1} parent=1 // pred_region
      %277 = dma.done [#allocation4], 32
    $region45: #{tpu_custom_call.1} parent=1 // pred_fallthru
      _
    %278 = vsyncpa [#allocation4], 1

</llo_original>
